<compile_context>
chip_gen: v6e
topology: v6e:2x2x1
jax: 0.10.0
libtpu: 0.0.40
codegen_flags: <defaults>
</compile_context>

<pallas_src>
import numpy as np
import jax
import jax.numpy as jnp
from jax.experimental import pallas as pl
from jax.experimental.pallas import tpu as pltpu


def make_fused_rgcn(num_nodes, h_dim, out_dim, num_rels, num_bases):
    """Build the fused 3-layer R-GCN pallas_call for the given static shapes."""
    N, H, O, R, B = num_nodes, h_dim, out_dim, num_rels, num_bases

    def kernel(comp1_ref, comp2_ref, comp3_ref,        # (R, B) f32, SMEM scalars
               adj_ref,                                # (R, N, N) f32, VMEM
               bases1_ref, wself1_ref, bias1_ref,      # (B, N, H), (N, H), (1, H)
               wfeat2_ref, bias2_ref,                  # (H, (B+1)*H), (1, H)
               wfeat3_ref, bias3_ref,                  # (H, (B+1)*O), (1, O)
               o_ref):                                 # (N, O)

        def folded_adj(comp_ref):
            # C_b = sum_r comp[r, b] * A[r]  : R*B VPU scale-adds (comp scalars
            # read from SMEM).  Cuts the (N,N)@(N,out) matmuls per layer R -> B.
            cs = []
            for b in range(B):
                c = comp_ref[0, b] * adj_ref[0]
                for r in range(1, R):
                    c = c + comp_ref[r, b] * adj_ref[r]
                cs.append(c)
            return cs

        # ---------------- layer 1: input_to_hidden ---------------------------
        # Input features are the one-hot identity (node IDs), so the feature
        # matmul is skipped: H1 = relu( sum_b C1_b @ basis1_b + W_self + bias ).
        c1 = folded_adj(comp1_ref)
        h = wself1_ref[...] + bias1_ref[...]
        for b in range(B):
            h = h + jnp.dot(c1[b], bases1_ref[b],
                            preferred_element_type=jnp.float32)
        h = jnp.maximum(h, 0.0)                        # (N, H), stays resident

        # ---------------- layers 2 & 3: general features ---------------------
        def rgcn_layer(x, comp_ref, wfeat_ref, bias_ref, d_out):
            c = folded_adj(comp_ref)
            # single lane-dense feature matmul: X @ [basis_0 | .. | basis_{B-1} | W_self]
            xw = jnp.dot(x, wfeat_ref[...], preferred_element_type=jnp.float32)
            g = xw[:, B * d_out:] + bias_ref[...]      # self-loop msg + bias
            for b in range(B):
                g = g + jnp.dot(c[b], xw[:, b * d_out:(b + 1) * d_out],
                                preferred_element_type=jnp.float32)
            return jnp.maximum(g, 0.0)

        h = rgcn_layer(h, comp2_ref, wfeat2_ref, bias2_ref, H)
        h = rgcn_layer(h, comp3_ref, wfeat3_ref, bias3_ref, O)
        o_ref[...] = h.astype(o_ref.dtype)

    smem = pl.BlockSpec(memory_space=pltpu.MemorySpace.SMEM)
    vmem = pl.BlockSpec(memory_space=pltpu.MemorySpace.VMEM)

    return pl.pallas_call(
        kernel,
        out_shape=jax.ShapeDtypeStruct((N, O), jnp.float32),
        in_specs=[smem, smem, smem] + [vmem] * 8,
        out_specs=vmem,
    )


def summarization_forward_pallas(params, adj, num_nodes, h_dim, out_dim,
                                 num_rels, num_bases):
    bases1, comp1, wself1, bias1 = params['l1']
    bases2, comp2, wself2, bias2 = params['l2']
    bases3, comp3, wself3, bias3 = params['l3']
    B = num_bases
    # Layout plumbing only (no compute hoisted): stack basis + self-loop weights
    # along lanes so each layer's feature matmul is one lane-dense MXU pass.
    wfeat2 = jnp.concatenate([bases2[b] for b in range(B)] + [wself2], axis=1)
    wfeat3 = jnp.concatenate([bases3[b] for b in range(B)] + [wself3], axis=1)

    fused = make_fused_rgcn(num_nodes, h_dim, out_dim, num_rels, num_bases)
    return fused(comp1, comp2, comp3, adj,
                 bases1, wself1, bias1,
                 wfeat2, bias2,
                 wfeat3, bias3)


# ----------------------------- pure-JAX reference ---------------------------
def rgcn_basis_layer_ref(x, adj, bases, comp, w_self, bias):
    w = jnp.einsum('rb,bio->rio', comp, bases)          # (R, in, out)
    xw = jnp.einsum('ni,rio->rno', x, w)                # (R, N, out)
    msg = jnp.einsum('rvn,rno->vo', adj, xw)            # (N, out)
    return jnp.maximum(msg + x @ w_self + bias, 0.0)


def summarization_forward_ref(params, adj, num_nodes):
    h = jnp.eye(num_nodes, dtype=jnp.float32)           # node-ID one-hot input
    h = rgcn_basis_layer_ref(h, adj, *params['l1'])
    h = rgcn_basis_layer_ref(h, adj, *params['l2'])
    h = rgcn_basis_layer_ref(h, adj, *params['l3'])
    return h


# ----------------------------- setup helpers --------------------------------
def init_layer_params(key, in_dim, out_dim, num_rels, num_bases):
    k1, k2, k3, k4 = jax.random.split(key, 4)
    bases = jax.random.normal(k1, (num_bases, in_dim, out_dim), jnp.float32) * 0.1
    comp = jax.random.normal(k2, (num_rels, num_bases), jnp.float32) * 0.5
    w_self = jax.random.normal(k3, (in_dim, out_dim), jnp.float32) * 0.1
    bias = jax.random.normal(k4, (1, out_dim), jnp.float32) * 0.01
    return bases, comp, w_self, bias


def build_synthetic_graph(num_nodes, num_rels):
    """Deterministic multi-relational graph; DGL-style edge_norm = 1/in_degree
    folded into a dense per-relation adjacency A[r, dst, src]."""
    edges = []
    for r in range(num_rels):
        for i in range(num_nodes):
            src, dst = i, (i + r + 1) % num_nodes
            edges.append((r, dst, src))
    in_deg = np.zeros((num_nodes,), np.float32)
    for _, dst, _ in edges:
        in_deg[dst] += 1.0
    adj = np.zeros((num_rels, num_nodes, num_nodes), np.float32)
    for r, dst, src in edges:
        adj[r, dst, src] += 1.0 / in_deg[dst]
    return jnp.asarray(adj)


if __name__ == "__main__":
    num_nodes, h_dim, out_dim, num_rels, num_bases = 16, 32, 16, 4, 2

    key = jax.random.PRNGKey(0)
    k1, k2, k3 = jax.random.split(key, 3)
    params = {
        'l1': init_layer_params(k1, num_nodes, h_dim, num_rels, num_bases),
        'l2': init_layer_params(k2, h_dim, h_dim, num_rels, num_bases),
        'l3': init_layer_params(k3, h_dim, out_dim, num_rels, num_bases),
    }
    adj = build_synthetic_graph(num_nodes, num_rels)

    out = summarization_forward_pallas(params, adj, num_nodes, h_dim, out_dim,
                                       num_rels, num_bases)
    out = jax.block_until_ready(out)

    ref = summarization_forward_ref(params, adj, num_nodes)
    ref = jax.block_until_ready(ref)

    assert out.shape == (num_nodes, out_dim)
    np.testing.assert_allclose(np.asarray(out), np.asarray(ref),
                               rtol=1e-5, atol=1e-5)
    print("KERNEL_OK")
</pallas_src>

<mosaic_0001>
module attributes {stable_mosaic.version = 11 : i64} {
  func.func @kernel(%arg0: memref<4x2xf32, #tpu.memory_space<smem>>, %arg1: memref<4x2xf32, #tpu.memory_space<smem>>, %arg2: memref<4x2xf32, #tpu.memory_space<smem>>, %arg3: memref<4x16x16xf32, #tpu.memory_space<vmem>>, %arg4: memref<2x16x32xf32, #tpu.memory_space<vmem>>, %arg5: memref<16x32xf32, #tpu.memory_space<vmem>>, %arg6: memref<1x32xf32, #tpu.memory_space<vmem>>, %arg7: memref<32x96xf32, #tpu.memory_space<vmem>>, %arg8: memref<1x32xf32, #tpu.memory_space<vmem>>, %arg9: memref<32x48xf32, #tpu.memory_space<vmem>>, %arg10: memref<1x16xf32, #tpu.memory_space<vmem>>, %arg11: memref<16x16xf32, #tpu.memory_space<vmem>>) attributes {dimension_semantics = [], scalar_prefetch = 0 : i64, scratch_operands = 0 : i64, tpu.core_type = #tpu.core_type<tc>} {
    %c0 = arith.constant 0 : index
    %c0_0 = arith.constant 0 : index
    %0 = memref.load %arg0[%c0, %c0_0] : memref<4x2xf32, #tpu.memory_space<smem>>
    %c0_1 = arith.constant 0 : index
    %c0_2 = arith.constant 0 : index
    %c0_3 = arith.constant 0 : index
    %1 = vector.load %arg3[%c0_1, %c0_2, %c0_3] : memref<4x16x16xf32, #tpu.memory_space<vmem>>, vector<1x16x16xf32>
    %2 = vector.shape_cast %1 : vector<1x16x16xf32> to vector<16x16xf32>
    %3 = vector.broadcast %0 : f32 to vector<16x16xf32>
    %4 = arith.mulf %3, %2 : vector<16x16xf32>
    %c1 = arith.constant 1 : index
    %c0_4 = arith.constant 0 : index
    %5 = memref.load %arg0[%c1, %c0_4] : memref<4x2xf32, #tpu.memory_space<smem>>
    %c1_5 = arith.constant 1 : index
    %c0_6 = arith.constant 0 : index
    %c0_7 = arith.constant 0 : index
    %6 = vector.load %arg3[%c1_5, %c0_6, %c0_7] : memref<4x16x16xf32, #tpu.memory_space<vmem>>, vector<1x16x16xf32>
    %7 = vector.shape_cast %6 : vector<1x16x16xf32> to vector<16x16xf32>
    %8 = vector.broadcast %5 : f32 to vector<16x16xf32>
    %9 = arith.mulf %8, %7 : vector<16x16xf32>
    %10 = arith.addf %4, %9 : vector<16x16xf32>
    %c2 = arith.constant 2 : index
    %c0_8 = arith.constant 0 : index
    %11 = memref.load %arg0[%c2, %c0_8] : memref<4x2xf32, #tpu.memory_space<smem>>
    %c2_9 = arith.constant 2 : index
    %c0_10 = arith.constant 0 : index
    %c0_11 = arith.constant 0 : index
    %12 = vector.load %arg3[%c2_9, %c0_10, %c0_11] : memref<4x16x16xf32, #tpu.memory_space<vmem>>, vector<1x16x16xf32>
    %13 = vector.shape_cast %12 : vector<1x16x16xf32> to vector<16x16xf32>
    %14 = vector.broadcast %11 : f32 to vector<16x16xf32>
    %15 = arith.mulf %14, %13 : vector<16x16xf32>
    %16 = arith.addf %10, %15 : vector<16x16xf32>
    %c3 = arith.constant 3 : index
    %c0_12 = arith.constant 0 : index
    %17 = memref.load %arg0[%c3, %c0_12] : memref<4x2xf32, #tpu.memory_space<smem>>
    %c3_13 = arith.constant 3 : index
    %c0_14 = arith.constant 0 : index
    %c0_15 = arith.constant 0 : index
    %18 = vector.load %arg3[%c3_13, %c0_14, %c0_15] : memref<4x16x16xf32, #tpu.memory_space<vmem>>, vector<1x16x16xf32>
    %19 = vector.shape_cast %18 : vector<1x16x16xf32> to vector<16x16xf32>
    %20 = vector.broadcast %17 : f32 to vector<16x16xf32>
    %21 = arith.mulf %20, %19 : vector<16x16xf32>
    %22 = arith.addf %16, %21 : vector<16x16xf32>
    %c0_16 = arith.constant 0 : index
    %c1_17 = arith.constant 1 : index
    %23 = memref.load %arg0[%c0_16, %c1_17] : memref<4x2xf32, #tpu.memory_space<smem>>
    %c0_18 = arith.constant 0 : index
    %c0_19 = arith.constant 0 : index
    %c0_20 = arith.constant 0 : index
    %24 = vector.load %arg3[%c0_18, %c0_19, %c0_20] : memref<4x16x16xf32, #tpu.memory_space<vmem>>, vector<1x16x16xf32>
    %25 = vector.shape_cast %24 : vector<1x16x16xf32> to vector<16x16xf32>
    %26 = vector.broadcast %23 : f32 to vector<16x16xf32>
    %27 = arith.mulf %26, %25 : vector<16x16xf32>
    %c1_21 = arith.constant 1 : index
    %c1_22 = arith.constant 1 : index
    %28 = memref.load %arg0[%c1_21, %c1_22] : memref<4x2xf32, #tpu.memory_space<smem>>
    %c1_23 = arith.constant 1 : index
    %c0_24 = arith.constant 0 : index
    %c0_25 = arith.constant 0 : index
    %29 = vector.load %arg3[%c1_23, %c0_24, %c0_25] : memref<4x16x16xf32, #tpu.memory_space<vmem>>, vector<1x16x16xf32>
    %30 = vector.shape_cast %29 : vector<1x16x16xf32> to vector<16x16xf32>
    %31 = vector.broadcast %28 : f32 to vector<16x16xf32>
    %32 = arith.mulf %31, %30 : vector<16x16xf32>
    %33 = arith.addf %27, %32 : vector<16x16xf32>
    %c2_26 = arith.constant 2 : index
    %c1_27 = arith.constant 1 : index
    %34 = memref.load %arg0[%c2_26, %c1_27] : memref<4x2xf32, #tpu.memory_space<smem>>
    %c2_28 = arith.constant 2 : index
    %c0_29 = arith.constant 0 : index
    %c0_30 = arith.constant 0 : index
    %35 = vector.load %arg3[%c2_28, %c0_29, %c0_30] : memref<4x16x16xf32, #tpu.memory_space<vmem>>, vector<1x16x16xf32>
    %36 = vector.shape_cast %35 : vector<1x16x16xf32> to vector<16x16xf32>
    %37 = vector.broadcast %34 : f32 to vector<16x16xf32>
    %38 = arith.mulf %37, %36 : vector<16x16xf32>
    %39 = arith.addf %33, %38 : vector<16x16xf32>
    %c3_31 = arith.constant 3 : index
    %c1_32 = arith.constant 1 : index
    %40 = memref.load %arg0[%c3_31, %c1_32] : memref<4x2xf32, #tpu.memory_space<smem>>
    %c3_33 = arith.constant 3 : index
    %c0_34 = arith.constant 0 : index
    %c0_35 = arith.constant 0 : index
    %41 = vector.load %arg3[%c3_33, %c0_34, %c0_35] : memref<4x16x16xf32, #tpu.memory_space<vmem>>, vector<1x16x16xf32>
    %42 = vector.shape_cast %41 : vector<1x16x16xf32> to vector<16x16xf32>
    %43 = vector.broadcast %40 : f32 to vector<16x16xf32>
    %44 = arith.mulf %43, %42 : vector<16x16xf32>
    %45 = arith.addf %39, %44 : vector<16x16xf32>
    %c0_36 = arith.constant 0 : index
    %c0_37 = arith.constant 0 : index
    %46 = vector.load %arg5[%c0_36, %c0_37] : memref<16x32xf32, #tpu.memory_space<vmem>>, vector<16x32xf32>
    %c0_38 = arith.constant 0 : index
    %c0_39 = arith.constant 0 : index
    %47 = vector.load %arg6[%c0_38, %c0_39] : memref<1x32xf32, #tpu.memory_space<vmem>>, vector<1x32xf32>
    %48 = vector.broadcast %47 : vector<1x32xf32> to vector<16x32xf32>
    %49 = arith.addf %46, %48 : vector<16x32xf32>
    %c0_40 = arith.constant 0 : index
    %c0_41 = arith.constant 0 : index
    %c0_42 = arith.constant 0 : index
    %50 = vector.load %arg4[%c0_40, %c0_41, %c0_42] : memref<2x16x32xf32, #tpu.memory_space<vmem>>, vector<1x16x32xf32>
    %51 = vector.shape_cast %50 : vector<1x16x32xf32> to vector<16x32xf32>
    %cst = arith.constant dense<0.000000e+00> : vector<16x32xf32>
    %52 = tpu.matmul %22, %51, %cst {dimension_numbers = #tpu.dot_dimension_numbers<[1], [0], [0], [1], [0, 0, 1, 1], [], []>} : vector<16x16xf32>, vector<16x32xf32>, vector<16x32xf32> -> vector<16x32xf32>
    %53 = arith.addf %49, %52 : vector<16x32xf32>
    %c1_43 = arith.constant 1 : index
    %c0_44 = arith.constant 0 : index
    %c0_45 = arith.constant 0 : index
    %54 = vector.load %arg4[%c1_43, %c0_44, %c0_45] : memref<2x16x32xf32, #tpu.memory_space<vmem>>, vector<1x16x32xf32>
    %55 = vector.shape_cast %54 : vector<1x16x32xf32> to vector<16x32xf32>
    %cst_46 = arith.constant dense<0.000000e+00> : vector<16x32xf32>
    %56 = tpu.matmul %45, %55, %cst_46 {dimension_numbers = #tpu.dot_dimension_numbers<[1], [0], [0], [1], [0, 0, 1, 1], [], []>} : vector<16x16xf32>, vector<16x32xf32>, vector<16x32xf32> -> vector<16x32xf32>
    %57 = arith.addf %53, %56 : vector<16x32xf32>
    %cst_47 = arith.constant 0.000000e+00 : f32
    %58 = vector.broadcast %cst_47 : f32 to vector<16x32xf32>
    %59 = arith.maximumf %57, %58 : vector<16x32xf32>
    %c0_48 = arith.constant 0 : index
    %c0_49 = arith.constant 0 : index
    %60 = memref.load %arg1[%c0_48, %c0_49] : memref<4x2xf32, #tpu.memory_space<smem>>
    %c0_50 = arith.constant 0 : index
    %c0_51 = arith.constant 0 : index
    %c0_52 = arith.constant 0 : index
    %61 = vector.load %arg3[%c0_50, %c0_51, %c0_52] : memref<4x16x16xf32, #tpu.memory_space<vmem>>, vector<1x16x16xf32>
    %62 = vector.shape_cast %61 : vector<1x16x16xf32> to vector<16x16xf32>
    %63 = vector.broadcast %60 : f32 to vector<16x16xf32>
    %64 = arith.mulf %63, %62 : vector<16x16xf32>
    %c1_53 = arith.constant 1 : index
    %c0_54 = arith.constant 0 : index
    %65 = memref.load %arg1[%c1_53, %c0_54] : memref<4x2xf32, #tpu.memory_space<smem>>
    %c1_55 = arith.constant 1 : index
    %c0_56 = arith.constant 0 : index
    %c0_57 = arith.constant 0 : index
    %66 = vector.load %arg3[%c1_55, %c0_56, %c0_57] : memref<4x16x16xf32, #tpu.memory_space<vmem>>, vector<1x16x16xf32>
    %67 = vector.shape_cast %66 : vector<1x16x16xf32> to vector<16x16xf32>
    %68 = vector.broadcast %65 : f32 to vector<16x16xf32>
    %69 = arith.mulf %68, %67 : vector<16x16xf32>
    %70 = arith.addf %64, %69 : vector<16x16xf32>
    %c2_58 = arith.constant 2 : index
    %c0_59 = arith.constant 0 : index
    %71 = memref.load %arg1[%c2_58, %c0_59] : memref<4x2xf32, #tpu.memory_space<smem>>
    %c2_60 = arith.constant 2 : index
    %c0_61 = arith.constant 0 : index
    %c0_62 = arith.constant 0 : index
    %72 = vector.load %arg3[%c2_60, %c0_61, %c0_62] : memref<4x16x16xf32, #tpu.memory_space<vmem>>, vector<1x16x16xf32>
    %73 = vector.shape_cast %72 : vector<1x16x16xf32> to vector<16x16xf32>
    %74 = vector.broadcast %71 : f32 to vector<16x16xf32>
    %75 = arith.mulf %74, %73 : vector<16x16xf32>
    %76 = arith.addf %70, %75 : vector<16x16xf32>
    %c3_63 = arith.constant 3 : index
    %c0_64 = arith.constant 0 : index
    %77 = memref.load %arg1[%c3_63, %c0_64] : memref<4x2xf32, #tpu.memory_space<smem>>
    %c3_65 = arith.constant 3 : index
    %c0_66 = arith.constant 0 : index
    %c0_67 = arith.constant 0 : index
    %78 = vector.load %arg3[%c3_65, %c0_66, %c0_67] : memref<4x16x16xf32, #tpu.memory_space<vmem>>, vector<1x16x16xf32>
    %79 = vector.shape_cast %78 : vector<1x16x16xf32> to vector<16x16xf32>
    %80 = vector.broadcast %77 : f32 to vector<16x16xf32>
    %81 = arith.mulf %80, %79 : vector<16x16xf32>
    %82 = arith.addf %76, %81 : vector<16x16xf32>
    %c0_68 = arith.constant 0 : index
    %c1_69 = arith.constant 1 : index
    %83 = memref.load %arg1[%c0_68, %c1_69] : memref<4x2xf32, #tpu.memory_space<smem>>
    %c0_70 = arith.constant 0 : index
    %c0_71 = arith.constant 0 : index
    %c0_72 = arith.constant 0 : index
    %84 = vector.load %arg3[%c0_70, %c0_71, %c0_72] : memref<4x16x16xf32, #tpu.memory_space<vmem>>, vector<1x16x16xf32>
    %85 = vector.shape_cast %84 : vector<1x16x16xf32> to vector<16x16xf32>
    %86 = vector.broadcast %83 : f32 to vector<16x16xf32>
    %87 = arith.mulf %86, %85 : vector<16x16xf32>
    %c1_73 = arith.constant 1 : index
    %c1_74 = arith.constant 1 : index
    %88 = memref.load %arg1[%c1_73, %c1_74] : memref<4x2xf32, #tpu.memory_space<smem>>
    %c1_75 = arith.constant 1 : index
    %c0_76 = arith.constant 0 : index
    %c0_77 = arith.constant 0 : index
    %89 = vector.load %arg3[%c1_75, %c0_76, %c0_77] : memref<4x16x16xf32, #tpu.memory_space<vmem>>, vector<1x16x16xf32>
    %90 = vector.shape_cast %89 : vector<1x16x16xf32> to vector<16x16xf32>
    %91 = vector.broadcast %88 : f32 to vector<16x16xf32>
    %92 = arith.mulf %91, %90 : vector<16x16xf32>
    %93 = arith.addf %87, %92 : vector<16x16xf32>
    %c2_78 = arith.constant 2 : index
    %c1_79 = arith.constant 1 : index
    %94 = memref.load %arg1[%c2_78, %c1_79] : memref<4x2xf32, #tpu.memory_space<smem>>
    %c2_80 = arith.constant 2 : index
    %c0_81 = arith.constant 0 : index
    %c0_82 = arith.constant 0 : index
    %95 = vector.load %arg3[%c2_80, %c0_81, %c0_82] : memref<4x16x16xf32, #tpu.memory_space<vmem>>, vector<1x16x16xf32>
    %96 = vector.shape_cast %95 : vector<1x16x16xf32> to vector<16x16xf32>
    %97 = vector.broadcast %94 : f32 to vector<16x16xf32>
    %98 = arith.mulf %97, %96 : vector<16x16xf32>
    %99 = arith.addf %93, %98 : vector<16x16xf32>
    %c3_83 = arith.constant 3 : index
    %c1_84 = arith.constant 1 : index
    %100 = memref.load %arg1[%c3_83, %c1_84] : memref<4x2xf32, #tpu.memory_space<smem>>
    %c3_85 = arith.constant 3 : index
    %c0_86 = arith.constant 0 : index
    %c0_87 = arith.constant 0 : index
    %101 = vector.load %arg3[%c3_85, %c0_86, %c0_87] : memref<4x16x16xf32, #tpu.memory_space<vmem>>, vector<1x16x16xf32>
    %102 = vector.shape_cast %101 : vector<1x16x16xf32> to vector<16x16xf32>
    %103 = vector.broadcast %100 : f32 to vector<16x16xf32>
    %104 = arith.mulf %103, %102 : vector<16x16xf32>
    %105 = arith.addf %99, %104 : vector<16x16xf32>
    %c0_88 = arith.constant 0 : index
    %c0_89 = arith.constant 0 : index
    %106 = vector.load %arg7[%c0_88, %c0_89] : memref<32x96xf32, #tpu.memory_space<vmem>>, vector<32x96xf32>
    %cst_90 = arith.constant dense<0.000000e+00> : vector<16x96xf32>
    %107 = tpu.matmul %59, %106, %cst_90 {dimension_numbers = #tpu.dot_dimension_numbers<[1], [0], [0], [1], [0, 0, 1, 1], [], []>} : vector<16x32xf32>, vector<32x96xf32>, vector<16x96xf32> -> vector<16x96xf32>
    %108 = vector.extract_strided_slice %107 {offsets = [0, 64], sizes = [16, 32], strides = [1, 1]} : vector<16x96xf32> to vector<16x32xf32>
    %c0_91 = arith.constant 0 : index
    %c0_92 = arith.constant 0 : index
    %109 = vector.load %arg8[%c0_91, %c0_92] : memref<1x32xf32, #tpu.memory_space<vmem>>, vector<1x32xf32>
    %110 = vector.broadcast %109 : vector<1x32xf32> to vector<16x32xf32>
    %111 = arith.addf %108, %110 : vector<16x32xf32>
    %112 = vector.extract_strided_slice %107 {offsets = [0, 0], sizes = [16, 32], strides = [1, 1]} : vector<16x96xf32> to vector<16x32xf32>
    %cst_93 = arith.constant dense<0.000000e+00> : vector<16x32xf32>
    %113 = tpu.matmul %82, %112, %cst_93 {dimension_numbers = #tpu.dot_dimension_numbers<[1], [0], [0], [1], [0, 0, 1, 1], [], []>} : vector<16x16xf32>, vector<16x32xf32>, vector<16x32xf32> -> vector<16x32xf32>
    %114 = arith.addf %111, %113 : vector<16x32xf32>
    %115 = vector.extract_strided_slice %107 {offsets = [0, 32], sizes = [16, 32], strides = [1, 1]} : vector<16x96xf32> to vector<16x32xf32>
    %cst_94 = arith.constant dense<0.000000e+00> : vector<16x32xf32>
    %116 = tpu.matmul %105, %115, %cst_94 {dimension_numbers = #tpu.dot_dimension_numbers<[1], [0], [0], [1], [0, 0, 1, 1], [], []>} : vector<16x16xf32>, vector<16x32xf32>, vector<16x32xf32> -> vector<16x32xf32>
    %117 = arith.addf %114, %116 : vector<16x32xf32>
    %cst_95 = arith.constant 0.000000e+00 : f32
    %118 = vector.broadcast %cst_95 : f32 to vector<16x32xf32>
    %119 = arith.maximumf %117, %118 : vector<16x32xf32>
    %c0_96 = arith.constant 0 : index
    %c0_97 = arith.constant 0 : index
    %120 = memref.load %arg2[%c0_96, %c0_97] : memref<4x2xf32, #tpu.memory_space<smem>>
    %c0_98 = arith.constant 0 : index
    %c0_99 = arith.constant 0 : index
    %c0_100 = arith.constant 0 : index
    %121 = vector.load %arg3[%c0_98, %c0_99, %c0_100] : memref<4x16x16xf32, #tpu.memory_space<vmem>>, vector<1x16x16xf32>
    %122 = vector.shape_cast %121 : vector<1x16x16xf32> to vector<16x16xf32>
    %123 = vector.broadcast %120 : f32 to vector<16x16xf32>
    %124 = arith.mulf %123, %122 : vector<16x16xf32>
    %c1_101 = arith.constant 1 : index
    %c0_102 = arith.constant 0 : index
    %125 = memref.load %arg2[%c1_101, %c0_102] : memref<4x2xf32, #tpu.memory_space<smem>>
    %c1_103 = arith.constant 1 : index
    %c0_104 = arith.constant 0 : index
    %c0_105 = arith.constant 0 : index
    %126 = vector.load %arg3[%c1_103, %c0_104, %c0_105] : memref<4x16x16xf32, #tpu.memory_space<vmem>>, vector<1x16x16xf32>
    %127 = vector.shape_cast %126 : vector<1x16x16xf32> to vector<16x16xf32>
    %128 = vector.broadcast %125 : f32 to vector<16x16xf32>
    %129 = arith.mulf %128, %127 : vector<16x16xf32>
    %130 = arith.addf %124, %129 : vector<16x16xf32>
    %c2_106 = arith.constant 2 : index
    %c0_107 = arith.constant 0 : index
    %131 = memref.load %arg2[%c2_106, %c0_107] : memref<4x2xf32, #tpu.memory_space<smem>>
    %c2_108 = arith.constant 2 : index
    %c0_109 = arith.constant 0 : index
    %c0_110 = arith.constant 0 : index
    %132 = vector.load %arg3[%c2_108, %c0_109, %c0_110] : memref<4x16x16xf32, #tpu.memory_space<vmem>>, vector<1x16x16xf32>
    %133 = vector.shape_cast %132 : vector<1x16x16xf32> to vector<16x16xf32>
    %134 = vector.broadcast %131 : f32 to vector<16x16xf32>
    %135 = arith.mulf %134, %133 : vector<16x16xf32>
    %136 = arith.addf %130, %135 : vector<16x16xf32>
    %c3_111 = arith.constant 3 : index
    %c0_112 = arith.constant 0 : index
    %137 = memref.load %arg2[%c3_111, %c0_112] : memref<4x2xf32, #tpu.memory_space<smem>>
    %c3_113 = arith.constant 3 : index
    %c0_114 = arith.constant 0 : index
    %c0_115 = arith.constant 0 : index
    %138 = vector.load %arg3[%c3_113, %c0_114, %c0_115] : memref<4x16x16xf32, #tpu.memory_space<vmem>>, vector<1x16x16xf32>
    %139 = vector.shape_cast %138 : vector<1x16x16xf32> to vector<16x16xf32>
    %140 = vector.broadcast %137 : f32 to vector<16x16xf32>
    %141 = arith.mulf %140, %139 : vector<16x16xf32>
    %142 = arith.addf %136, %141 : vector<16x16xf32>
    %c0_116 = arith.constant 0 : index
    %c1_117 = arith.constant 1 : index
    %143 = memref.load %arg2[%c0_116, %c1_117] : memref<4x2xf32, #tpu.memory_space<smem>>
    %c0_118 = arith.constant 0 : index
    %c0_119 = arith.constant 0 : index
    %c0_120 = arith.constant 0 : index
    %144 = vector.load %arg3[%c0_118, %c0_119, %c0_120] : memref<4x16x16xf32, #tpu.memory_space<vmem>>, vector<1x16x16xf32>
    %145 = vector.shape_cast %144 : vector<1x16x16xf32> to vector<16x16xf32>
    %146 = vector.broadcast %143 : f32 to vector<16x16xf32>
    %147 = arith.mulf %146, %145 : vector<16x16xf32>
    %c1_121 = arith.constant 1 : index
    %c1_122 = arith.constant 1 : index
    %148 = memref.load %arg2[%c1_121, %c1_122] : memref<4x2xf32, #tpu.memory_space<smem>>
    %c1_123 = arith.constant 1 : index
    %c0_124 = arith.constant 0 : index
    %c0_125 = arith.constant 0 : index
    %149 = vector.load %arg3[%c1_123, %c0_124, %c0_125] : memref<4x16x16xf32, #tpu.memory_space<vmem>>, vector<1x16x16xf32>
    %150 = vector.shape_cast %149 : vector<1x16x16xf32> to vector<16x16xf32>
    %151 = vector.broadcast %148 : f32 to vector<16x16xf32>
    %152 = arith.mulf %151, %150 : vector<16x16xf32>
    %153 = arith.addf %147, %152 : vector<16x16xf32>
    %c2_126 = arith.constant 2 : index
    %c1_127 = arith.constant 1 : index
    %154 = memref.load %arg2[%c2_126, %c1_127] : memref<4x2xf32, #tpu.memory_space<smem>>
    %c2_128 = arith.constant 2 : index
    %c0_129 = arith.constant 0 : index
    %c0_130 = arith.constant 0 : index
    %155 = vector.load %arg3[%c2_128, %c0_129, %c0_130] : memref<4x16x16xf32, #tpu.memory_space<vmem>>, vector<1x16x16xf32>
    %156 = vector.shape_cast %155 : vector<1x16x16xf32> to vector<16x16xf32>
    %157 = vector.broadcast %154 : f32 to vector<16x16xf32>
    %158 = arith.mulf %157, %156 : vector<16x16xf32>
    %159 = arith.addf %153, %158 : vector<16x16xf32>
    %c3_131 = arith.constant 3 : index
    %c1_132 = arith.constant 1 : index
    %160 = memref.load %arg2[%c3_131, %c1_132] : memref<4x2xf32, #tpu.memory_space<smem>>
    %c3_133 = arith.constant 3 : index
    %c0_134 = arith.constant 0 : index
    %c0_135 = arith.constant 0 : index
    %161 = vector.load %arg3[%c3_133, %c0_134, %c0_135] : memref<4x16x16xf32, #tpu.memory_space<vmem>>, vector<1x16x16xf32>
    %162 = vector.shape_cast %161 : vector<1x16x16xf32> to vector<16x16xf32>
    %163 = vector.broadcast %160 : f32 to vector<16x16xf32>
    %164 = arith.mulf %163, %162 : vector<16x16xf32>
    %165 = arith.addf %159, %164 : vector<16x16xf32>
    %c0_136 = arith.constant 0 : index
    %c0_137 = arith.constant 0 : index
    %166 = vector.load %arg9[%c0_136, %c0_137] : memref<32x48xf32, #tpu.memory_space<vmem>>, vector<32x48xf32>
    %cst_138 = arith.constant dense<0.000000e+00> : vector<16x48xf32>
    %167 = tpu.matmul %119, %166, %cst_138 {dimension_numbers = #tpu.dot_dimension_numbers<[1], [0], [0], [1], [0, 0, 1, 1], [], []>} : vector<16x32xf32>, vector<32x48xf32>, vector<16x48xf32> -> vector<16x48xf32>
    %168 = vector.extract_strided_slice %167 {offsets = [0, 32], sizes = [16, 16], strides = [1, 1]} : vector<16x48xf32> to vector<16x16xf32>
    %c0_139 = arith.constant 0 : index
    %c0_140 = arith.constant 0 : index
    %169 = vector.load %arg10[%c0_139, %c0_140] : memref<1x16xf32, #tpu.memory_space<vmem>>, vector<1x16xf32>
    %170 = vector.broadcast %169 : vector<1x16xf32> to vector<16x16xf32>
    %171 = arith.addf %168, %170 : vector<16x16xf32>
    %172 = vector.extract_strided_slice %167 {offsets = [0, 0], sizes = [16, 16], strides = [1, 1]} : vector<16x48xf32> to vector<16x16xf32>
    %cst_141 = arith.constant dense<0.000000e+00> : vector<16x16xf32>
    %173 = tpu.matmul %142, %172, %cst_141 {dimension_numbers = #tpu.dot_dimension_numbers<[1], [0], [0], [1], [0, 0, 1, 1], [], []>} : vector<16x16xf32>, vector<16x16xf32>, vector<16x16xf32> -> vector<16x16xf32>
    %174 = arith.addf %171, %173 : vector<16x16xf32>
    %175 = vector.extract_strided_slice %167 {offsets = [0, 16], sizes = [16, 16], strides = [1, 1]} : vector<16x48xf32> to vector<16x16xf32>
    %cst_142 = arith.constant dense<0.000000e+00> : vector<16x16xf32>
    %176 = tpu.matmul %165, %175, %cst_142 {dimension_numbers = #tpu.dot_dimension_numbers<[1], [0], [0], [1], [0, 0, 1, 1], [], []>} : vector<16x16xf32>, vector<16x16xf32>, vector<16x16xf32> -> vector<16x16xf32>
    %177 = arith.addf %174, %176 : vector<16x16xf32>
    %cst_143 = arith.constant 0.000000e+00 : f32
    %178 = vector.broadcast %cst_143 : f32 to vector<16x16xf32>
    %179 = arith.maximumf %177, %178 : vector<16x16xf32>
    %c0_144 = arith.constant 0 : index
    %c0_145 = arith.constant 0 : index
    %180 = vector.load %arg11[%c0_144, %c0_145] : memref<16x16xf32, #tpu.memory_space<vmem>>, vector<16x16xf32>
    tpu.vector_store %arg11[%c0_144, %c0_145], %179 {strides = array<i32>} : memref<16x16xf32, #tpu.memory_space<vmem>>, vector<16x16xf32>,
    return
  }
}

</mosaic_0001>

<llo_original>
// kernel: tpu_custom_call.1
$region0: #{tpu_custom_call.1}
  #allocation0 [shape = 'u32[]', space=smem, size = 0x4, offset = 0x4, fixed_abs, tag = 'smem constant byte address 0x4 - core index']
  #allocation1 [shape = 'u32[144,128]{1,0:T(1,128)}', space=vmem, size = 0x12000, scoped, tag = 'internal scratch']
  %s0 = inlined_call_operand.vmem [shape: f32[4,2], index: 0, kind: input, shape index: {}]
  %s1 = inlined_call_operand.vmem [shape: f32[4,2], index: 1, kind: input, shape index: {}]
  %s2 = inlined_call_operand.vmem [shape: f32[4,2], index: 2, kind: input, shape index: {}]
  %s3 = inlined_call_operand.hbm [shape: f32[4,16,16], index: 3, kind: input, shape index: {}]
  %s4 = inlined_call_operand.hbm [shape: f32[2,16,32], index: 4, kind: input, shape index: {}]
  %s5 = inlined_call_operand.hbm [shape: f32[16,32], index: 5, kind: input, shape index: {}]
  %s6 = inlined_call_operand.vmem [shape: f32[1,32], index: 6, kind: input, shape index: {}]
  %s7 = inlined_call_operand.hbm [shape: f32[32,96], index: 7, kind: input, shape index: {}]
  %s8 = inlined_call_operand.vmem [shape: f32[1,32], index: 8, kind: input, shape index: {}]
  %s9 = inlined_call_operand.vmem [shape: f32[32,48], index: 9, kind: input, shape index: {}]
  %s10 = inlined_call_operand.vmem [shape: f32[1,16], index: 10, kind: input, shape index: {}]
  %s11 = inlined_call_operand.hbm [shape: f32[16,16], index: 11, kind: output, shape index: {}]
  %s12 = sld [smem:[#allocation0]]
  $region82: #{tpu_custom_call.1} parent=0
    _
  %s14 = ssub.s32 1, %s12
  %s15 = scalar_select 0, %s14, %s12
  $region1: #{tpu_custom_call.1} parent=0
    #allocation2 [shape = 'u8[2048]{0}', space=smem, size = 0x800, scoped, tag = 'input window, operand 0, single buffered']
    #allocation3 [shape = 's32[1]{0}', space=sflag, size = 0x4, scoped, tag = 'scoped memory for tpu_custom_call.1']
    #allocation4 [shape = 's32[1]{0}', space=sflag, size = 0x4, scoped, tag = 'scoped memory for tpu_custom_call.1']
    #allocation5 [shape = 's32[1]{0}', space=sflag, size = 0x4, scoped, tag = 'scoped memory for tpu_custom_call.1']
    #allocation6 [shape = 'u8[2048]{0}', space=smem, size = 0x800, scoped, tag = 'input window, operand 1, single buffered']
    #allocation7 [shape = 's32[1]{0}', space=sflag, size = 0x4, scoped, tag = 'scoped memory for tpu_custom_call.1']
    #allocation8 [shape = 'u8[2048]{0}', space=smem, size = 0x800, scoped, tag = 'input window, operand 2, single buffered']
    #allocation9 [shape = 'u8[32768]{0}', space=vmem, size = 0x8000, scoped, tag = 'input window, operand 3, single buffered']
    #allocation10 [shape = 'u8[16384]{0}', space=vmem, size = 0x4000, scoped, tag = 'input window, operand 4, single buffered']
    #allocation11 [shape = 's32[1]{0}', space=sflag, size = 0x4, scoped, tag = 'scoped memory for tpu_custom_call.1']
    #allocation12 [shape = 'u8[8192]{0}', space=vmem, size = 0x2000, scoped, tag = 'input window, operand 5, single buffered']
    #allocation13 [shape = 'u8[16384]{0}', space=vmem, size = 0x4000, scoped, tag = 'input window, operand 7, single buffered']
    #allocation14 [shape = 's32[1]{0}', space=sflag, size = 0x4, scoped, tag = 'scoped memory for tpu_custom_call.1']
    #allocation15 [shape = 'u8[8192]{0}', space=vmem, size = 0x2000, scoped, tag = 'output window, operand 0, single buffered']
    %16 = vsyncpa [#allocation5], 0
    %17 = vsyncpa [#allocation7], 0
    %18 = vsyncpa [#allocation3], 0
    %19 = vsyncpa [#allocation11], 0
    %20 = vsyncpa [#allocation14], 0
    %21 = vsyncpa [#allocation4], 0
    // Predicated region
    $region2: #{tpu_custom_call.1} parent=1 // pred_check
      _
    $region3: #{tpu_custom_call.1} parent=1 // pred_check_branch
      %23 = sbr.rel (0) target = $region5
    $region4: #{tpu_custom_call.1} parent=1 // pred_region
      %s25 = ssub.s32 64, 64
      %26 = vsyncadd [#allocation5], %s25
      %s28 = sshll.u32 %s0, 4
      %s29 = int_to_ptr.vmem [resolvable:$true] %s28
      %31 = dma.vmem_to_smem %s29, 64, [#allocation2], [#allocation5]
    $region5: #{tpu_custom_call.1} parent=1 // pred_fallthru
      _
    // Predicated region
    $region6: #{tpu_custom_call.1} parent=1 // pred_check
      _
    $region7: #{tpu_custom_call.1} parent=1 // pred_check_branch
      %33 = sbr.rel (0) target = $region9
    $region8: #{tpu_custom_call.1} parent=1 // pred_region
      %s35 = ssub.s32 64, 64
      %36 = vsyncadd [#allocation7], %s35
      %s38 = sshll.u32 %s1, 4
      %s39 = int_to_ptr.vmem [resolvable:$true] %s38
      %41 = dma.vmem_to_smem %s39, 64, [#allocation6], [#allocation7]
    $region9: #{tpu_custom_call.1} parent=1 // pred_fallthru
      _
    // Predicated region
    $region10: #{tpu_custom_call.1} parent=1 // pred_check
      _
    $region11: #{tpu_custom_call.1} parent=1 // pred_check_branch
      %43 = sbr.rel (0) target = $region13
    $region12: #{tpu_custom_call.1} parent=1 // pred_region
      %s45 = ssub.s32 64, 64
      %46 = vsyncadd [#allocation7], %s45
      %s48 = sshll.u32 %s2, 4
      %s49 = int_to_ptr.vmem [resolvable:$true] %s48
      %51 = dma.vmem_to_smem %s49, 64, [#allocation8], [#allocation7]
    $region13: #{tpu_custom_call.1} parent=1 // pred_fallthru
      _
    // Predicated region
    $region14: #{tpu_custom_call.1} parent=1 // pred_check
      _
    $region15: #{tpu_custom_call.1} parent=1 // pred_check_branch
      %53 = sbr.rel (0) target = $region17
    $region16: #{tpu_custom_call.1} parent=1 // pred_region
      %s55 = ssub.s32 1024, 1024
      %56 = vsyncadd [#allocation3], %s55
      %s57 = sshll.u32 [#allocation9], 4
      %s58 = int_to_ptr.vmem [resolvable:$true] %s57
      %63 = dma.hbm_to_vmem [thread:$0]  %s3, 1024, %s58, [#allocation3], 128, 128, 8
    $region17: #{tpu_custom_call.1} parent=1 // pred_fallthru
      _
    // Predicated region
    $region18: #{tpu_custom_call.1} parent=1 // pred_check
      _
    $region19: #{tpu_custom_call.1} parent=1 // pred_check_branch
      %65 = sbr.rel (0) target = $region21
    $region20: #{tpu_custom_call.1} parent=1 // pred_region
      %s67 = ssub.s32 512, 512
      %68 = vsyncadd [#allocation11], %s67
      %s69 = sshll.u32 [#allocation10], 4
      %s70 = int_to_ptr.vmem [resolvable:$true] %s69
      %75 = dma.hbm_to_vmem [thread:$0]  %s4, 512, %s70, [#allocation11], 128, 128, 8
    $region21: #{tpu_custom_call.1} parent=1 // pred_fallthru
      _
    // Predicated region
    $region22: #{tpu_custom_call.1} parent=1 // pred_check
      _
    $region23: #{tpu_custom_call.1} parent=1 // pred_check_branch
      %77 = sbr.rel (0) target = $region25
    $region24: #{tpu_custom_call.1} parent=1 // pred_region
      %s79 = ssub.s32 256, 256
      %80 = vsyncadd [#allocation11], %s79
      %s81 = sshll.u32 [#allocation12], 4
      %s82 = int_to_ptr.vmem [resolvable:$true] %s81
      %87 = dma.hbm_to_vmem [thread:$0]  %s5, 256, %s82, [#allocation11], 128, 128, 8
    $region25: #{tpu_custom_call.1} parent=1 // pred_fallthru
      _
    // Predicated region
    $region26: #{tpu_custom_call.1} parent=1 // pred_check
      _
    $region27: #{tpu_custom_call.1} parent=1 // pred_check_branch
      %89 = sbr.rel (0) target = $region29
    $region28: #{tpu_custom_call.1} parent=1 // pred_region
      _
    $region29: #{tpu_custom_call.1} parent=1 // pred_fallthru
      _
    // Predicated region
    $region30: #{tpu_custom_call.1} parent=1 // pred_check
      _
    $region31: #{tpu_custom_call.1} parent=1 // pred_check_branch
      %91 = sbr.rel (0) target = $region33
    $region32: #{tpu_custom_call.1} parent=1 // pred_region
      %s93 = ssub.s32 512, 512
      %94 = vsyncadd [#allocation14], %s93
      %s95 = sshll.u32 [#allocation13], 4
      %s96 = int_to_ptr.vmem [resolvable:$true] %s95
      %101 = dma.hbm_to_vmem [thread:$0]  %s7, 512, %s96, [#allocation14], 128, 128, 8
    $region33: #{tpu_custom_call.1} parent=1 // pred_fallthru
      _
    // Predicated region
    $region34: #{tpu_custom_call.1} parent=1 // pred_check
      _
    $region35: #{tpu_custom_call.1} parent=1 // pred_check_branch
      %103 = sbr.rel (0) target = $region37
    $region36: #{tpu_custom_call.1} parent=1 // pred_region
      _
    $region37: #{tpu_custom_call.1} parent=1 // pred_fallthru
      _
    // Predicated region
    $region38: #{tpu_custom_call.1} parent=1 // pred_check
      _
    $region39: #{tpu_custom_call.1} parent=1 // pred_check_branch
      %105 = sbr.rel (0) target = $region41
    $region40: #{tpu_custom_call.1} parent=1 // pred_region
      _
    $region41: #{tpu_custom_call.1} parent=1 // pred_fallthru
      _
    // Predicated region
    $region42: #{tpu_custom_call.1} parent=1 // pred_check
      _
    $region43: #{tpu_custom_call.1} parent=1 // pred_check_branch
      %107 = sbr.rel (0) target = $region45
    $region44: #{tpu_custom_call.1} parent=1 // pred_region
      _
    $region45: #{tpu_custom_call.1} parent=1 // pred_fallthru
      _
    // Predicated region
    $region46: #{tpu_custom_call.1} parent=1 // pred_check
      _
    $region47: #{tpu_custom_call.1} parent=1 // pred_check_branch
      %109 = sbr.rel (0) target = $region49
    $region48: #{tpu_custom_call.1} parent=1 // pred_region
      %110 = dma.done [#allocation5], 64
    $region49: #{tpu_custom_call.1} parent=1 // pred_fallthru
      _
    // Predicated region
    $region50: #{tpu_custom_call.1} parent=1 // pred_check
      _
    $region51: #{tpu_custom_call.1} parent=1 // pred_check_branch
      %112 = sbr.rel (0) target = $region53
    $region52: #{tpu_custom_call.1} parent=1 // pred_region
      %113 = dma.done [#allocation7], 64
    $region53: #{tpu_custom_call.1} parent=1 // pred_fallthru
      _
    // Predicated region
    $region54: #{tpu_custom_call.1} parent=1 // pred_check
      _
    $region55: #{tpu_custom_call.1} parent=1 // pred_check_branch
      %115 = sbr.rel (0) target = $region57
    $region56: #{tpu_custom_call.1} parent=1 // pred_region
      %116 = dma.done [#allocation7], 64
    $region57: #{tpu_custom_call.1} parent=1 // pred_fallthru
      _
    // Predicated region
    $region58: #{tpu_custom_call.1} parent=1 // pred_check
      _
    $region59: #{tpu_custom_call.1} parent=1 // pred_check_branch
      %118 = sbr.rel (0) target = $region61
    $region60: #{tpu_custom_call.1} parent=1 // pred_region
      %119 = dma.done [#allocation3], 1024
    $region61: #{tpu_custom_call.1} parent=1 // pred_fallthru
      _
    // Predicated region
    $region62: #{tpu_custom_call.1} parent=1 // pred_check
      _
    $region63: #{tpu_custom_call.1} parent=1 // pred_check_branch
      %121 = sbr.rel (0) target = $region65
    $region64: #{tpu_custom_call.1} parent=1 // pred_region
      %122 = dma.done [#allocation11], 512
    $region65: #{tpu_custom_call.1} parent=1 // pred_fallthru
      _
    // Predicated region
    $region66: #{tpu_custom_call.1} parent=1 // pred_check
      _
    $region67: #{tpu_custom_call.1} parent=1 // pred_check_branch
      %124 = sbr.rel (0) target = $region69
    $region68: #{tpu_custom_call.1} parent=1 // pred_region
      %125 = dma.done [#allocation11], 256
    $region69: #{tpu_custom_call.1} parent=1 // pred_fallthru
      _
    // Predicated region
    $region70: #{tpu_custom_call.1} parent=1 // pred_check
      _
    $region71: #{tpu_custom_call.1} parent=1 // pred_check_branch
      %127 = sbr.rel (0) target = $region73
    $region72: #{tpu_custom_call.1} parent=1 // pred_region
      %128 = dma.done [#allocation14], 512
    $region73: #{tpu_custom_call.1} parent=1 // pred_fallthru
      _
    %129 = sfence
    %s130 = sld [smem:[#allocation2]]
    %v131 = vld [vmem:[#allocation9] sm:$0xff]
    %v132 = vld [vmem:[#allocation9 + $0x8] sm:$0xff]
    %v133 = vstv %s130
    %v134 = vmul.f32 %v133, %v131
    %v135 = vmul.f32 %v133, %v132
    %s136 = sld [smem:[#allocation2 + $0x80]]
    %s137 = scalar_lea.vmem [#allocation9], 16
    %v138 = vld [vmem:[%s137] sm:$0xff]
    %v139 = vld [vmem:[%s137 + $0x8] sm:$0xff]
    %v140 = vstv %s136
    %v141 = vmul.f32 %v140, %v138
    %v142 = vmul.f32 %v140, %v139
    %v143 = vadd.f32 %v134, %v141
    %v144 = vadd.f32 %v135, %v142
    %s145 = sld [smem:[#allocation2 + $0x100]]
    %s146 = scalar_lea.vmem [#allocation9], 32
    %v147 = vld [vmem:[%s146] sm:$0xff]
    %v148 = vld [vmem:[%s146 + $0x8] sm:$0xff]
    %v149 = vstv %s145
    %v150 = vmul.f32 %v149, %v147
    %v151 = vmul.f32 %v149, %v148
    %v152 = vadd.f32 %v143, %v150
    %v153 = vadd.f32 %v144, %v151
    %s154 = sld [smem:[#allocation2 + $0x180]]
    %s155 = scalar_lea.vmem [#allocation9], 48
    %v156 = vld [vmem:[%s155] sm:$0xff]
    %v157 = vld [vmem:[%s155 + $0x8] sm:$0xff]
    %v158 = vstv %s154
    %v159 = vmul.f32 %v158, %v156
    %v160 = vmul.f32 %v158, %v157
    %v161 = vadd.f32 %v152, %v159
    %v162 = vadd.f32 %v153, %v160
    %s163 = sld [smem:[#allocation2 + $0x1]]
    %v164 = vstv %s163
    %v165 = vmul.f32 %v164, %v131
    %v166 = vmul.f32 %v164, %v132
    %s167 = sld [smem:[#allocation2 + $0x81]]
    %v168 = vstv %s167
    %v169 = vmul.f32 %v168, %v138
    %v170 = vmul.f32 %v168, %v139
    %v171 = vadd.f32 %v165, %v169
    %v172 = vadd.f32 %v166, %v170
    %s173 = sld [smem:[#allocation2 + $0x101]]
    %v174 = vstv %s173
    %v175 = vmul.f32 %v174, %v147
    %v176 = vmul.f32 %v174, %v148
    %v177 = vadd.f32 %v171, %v175
    %v178 = vadd.f32 %v172, %v176
    %s179 = sld [smem:[#allocation2 + $0x181]]
    %v180 = vstv %s179
    %v181 = vmul.f32 %v180, %v156
    %v182 = vmul.f32 %v180, %v157
    %v183 = vadd.f32 %v177, %v181
    %v184 = vadd.f32 %v178, %v182
    %v185 = vld [vmem:[#allocation12] sm:$0xff]
    %v186 = vld [vmem:[#allocation12 + $0x8] sm:$0xff]
    %v187 = vld [vmem:[%s6] sm:$0x1]
    %v189 = vlaneseq
    %v190 = vshrl.u32 %v189, 7
    %v191 = vsub.s32 0, %v190
    %v192 = vrot.slane %v187, %v191
    %v194 = vadd.f32 %v185, %v192
    %v195 = vadd.f32 %v186, %v192
    %v196 = vld [vmem:[#allocation10] sm:$0xff]
    %v197 = vld [vmem:[#allocation10 + $0x8] sm:$0xff]
    %vm198 = vcmask 130048
    %v200 = vsel %vm198, %v161, 0
    %v203 = vsel %vm198, %v162, 0
    %205 = vmatprep.subr.mxu0 0.0
    %206 = vmatpush1.msra.mxu0 0.0
    %207 = vmatprep.subr.mxu0 0.0
    %208 = vmatpush1.msra.mxu0 0.0
    %209 = vmatprep.subr.mxu0 0.0
    %210 = vmatpush1.msra.mxu0 0.0
    %211 = vmatprep.subr.mxu0 0.0
    %212 = vmatpush1.msra.mxu0 0.0
    %213 = vmatprep.subr.mxu0 0.0
    %214 = vmatpush1.msra.mxu0 0.0
    %215 = vmatprep.subr.mxu0 0.0
    %216 = vmatpush1.msra.mxu0 0.0
    %217 = vmatprep.subr.mxu0 0.0
    %218 = vmatpush1.msra.mxu0 0.0
    %219 = vmatprep.subr.mxu0 0.0
    %220 = vmatpush1.msra.mxu0 0.0
    %221 = vmatprep.subr.mxu0 0.0
    %222 = vmatpush1.msra.mxu0 0.0
    %223 = vmatprep.subr.mxu0 0.0
    %224 = vmatpush1.msra.mxu0 0.0
    %225 = vmatprep.subr.mxu0 0.0
    %226 = vmatpush1.msra.mxu0 0.0
    %227 = vmatprep.subr.mxu0 0.0
    %228 = vmatpush1.msra.mxu0 0.0
    %229 = vmatprep.subr.mxu0 0.0
    %230 = vmatpush1.msra.mxu0 0.0
    %231 = vmatprep.subr.mxu0 0.0
    %232 = vmatpush1.msra.mxu0 0.0
    %233 = vmatprep.subr.mxu0 0.0
    %234 = vmatpush1.msra.mxu0 %v197
    %235 = vmatprep.subr.mxu0 0.0
    %236 = vmatpush1.msra.mxu0 %v196
    %237 = vmatprep.subr.mxu0 0.0
    %238 = vmatpush2.msra.mxu0 0.0
    %239 = vmatprep.subr.mxu0 0.0
    %240 = vmatpush2.msra.mxu0 0.0
    %241 = vmatprep.subr.mxu0 0.0
    %242 = vmatpush2.msra.mxu0 0.0
    %243 = vmatprep.subr.mxu0 0.0
    %244 = vmatpush2.msra.mxu0 0.0
    %245 = vmatprep.subr.mxu0 0.0
    %246 = vmatpush2.msra.mxu0 0.0
    %247 = vmatprep.subr.mxu0 0.0
    %248 = vmatpush2.msra.mxu0 0.0
    %249 = vmatprep.subr.mxu0 0.0
    %250 = vmatpush2.msra.mxu0 0.0
    %251 = vmatprep.subr.mxu0 0.0
    %252 = vmatpush2.msra.mxu0 0.0
    %253 = vmatprep.subr.mxu0 0.0
    %254 = vmatpush2.msra.mxu0 0.0
    %255 = vmatprep.subr.mxu0 0.0
    %256 = vmatpush2.msra.mxu0 0.0
    %257 = vmatprep.subr.mxu0 0.0
    %258 = vmatpush2.msra.mxu0 0.0
    %259 = vmatprep.subr.mxu0 0.0
    %260 = vmatpush2.msra.mxu0 0.0
    %261 = vmatprep.subr.mxu0 0.0
    %262 = vmatpush2.msra.mxu0 0.0
    %263 = vmatprep.subr.mxu0 0.0
    %264 = vmatpush2.msra.mxu0 0.0
    %265 = vmatprep.subr.mxu0 0.0
    %266 = vmatpush2.msra.mxu0 0.0
    %267 = vmatprep.subr.mxu0 0.0
    %268 = vmatpush2.msra.mxu0 0.0
    %269 = vmatprep.mubr.f32.mxu0 0.0
    %270 = vmatmul.mubr.f32.gmra.mxu0 %v200
    %v271 = vpop.f32.mrf.mxu0
    %v272 = vadd.f32 0.0, %v271
    %v273 = vpop.f32.mrf.mxu0
    %274 = vmatprep.mubr.f32.mxu0 0.0
    %275 = vmatmul.mubr.f32.gmra.mxu0 %v203
    %v276 = vpop.f32.mrf.mxu0
    %v277 = vadd.f32 0.0, %v276
    %v278 = vpop.f32.mrf.mxu0
    %279 = vdwg.mxu0
    %v280 = vadd.f32 %v194, %v272
    %v281 = vadd.f32 %v195, %v277
    %s282 = scalar_lea.vmem [#allocation10], 16
    %v283 = vld [vmem:[%s282] sm:$0xff]
    %v284 = vld [vmem:[%s282 + $0x8] sm:$0xff]
    %v286 = vsel %vm198, %v183, 0
    %v289 = vsel %vm198, %v184, 0
    %291 = vmatprep.subr.mxu0 0.0
    %292 = vmatpush1.msra.mxu0 0.0
    %293 = vmatprep.subr.mxu0 0.0
    %294 = vmatpush1.msra.mxu0 0.0
    %295 = vmatprep.subr.mxu0 0.0
    %296 = vmatpush1.msra.mxu0 0.0
    %297 = vmatprep.subr.mxu0 0.0
    %298 = vmatpush1.msra.mxu0 0.0
    %299 = vmatprep.subr.mxu0 0.0
    %300 = vmatpush1.msra.mxu0 0.0
    %301 = vmatprep.subr.mxu0 0.0
    %302 = vmatpush1.msra.mxu0 0.0
    %303 = vmatprep.subr.mxu0 0.0
    %304 = vmatpush1.msra.mxu0 0.0
    %305 = vmatprep.subr.mxu0 0.0
    %306 = vmatpush1.msra.mxu0 0.0
    %307 = vmatprep.subr.mxu0 0.0
    %308 = vmatpush1.msra.mxu0 0.0
    %309 = vmatprep.subr.mxu0 0.0
    %310 = vmatpush1.msra.mxu0 0.0
    %311 = vmatprep.subr.mxu0 0.0
    %312 = vmatpush1.msra.mxu0 0.0
    %313 = vmatprep.subr.mxu0 0.0
    %314 = vmatpush1.msra.mxu0 0.0
    %315 = vmatprep.subr.mxu0 0.0
    %316 = vmatpush1.msra.mxu0 0.0
    %317 = vmatprep.subr.mxu0 0.0
    %318 = vmatpush1.msra.mxu0 0.0
    %319 = vmatprep.subr.mxu0 0.0
    %320 = vmatpush1.msra.mxu0 %v284
    %321 = vmatprep.subr.mxu0 0.0
    %322 = vmatpush1.msra.mxu0 %v283
    %323 = vmatprep.subr.mxu0 0.0
    %324 = vmatpush2.msra.mxu0 0.0
    %325 = vmatprep.subr.mxu0 0.0
    %326 = vmatpush2.msra.mxu0 0.0
    %327 = vmatprep.subr.mxu0 0.0
    %328 = vmatpush2.msra.mxu0 0.0
    %329 = vmatprep.subr.mxu0 0.0
    %330 = vmatpush2.msra.mxu0 0.0
    %331 = vmatprep.subr.mxu0 0.0
    %332 = vmatpush2.msra.mxu0 0.0
    %333 = vmatprep.subr.mxu0 0.0
    %334 = vmatpush2.msra.mxu0 0.0
    %335 = vmatprep.subr.mxu0 0.0
    %336 = vmatpush2.msra.mxu0 0.0
    %337 = vmatprep.subr.mxu0 0.0
    %338 = vmatpush2.msra.mxu0 0.0
    %339 = vmatprep.subr.mxu0 0.0
    %340 = vmatpush2.msra.mxu0 0.0
    %341 = vmatprep.subr.mxu0 0.0
    %342 = vmatpush2.msra.mxu0 0.0
    %343 = vmatprep.subr.mxu0 0.0
    %344 = vmatpush2.msra.mxu0 0.0
    %345 = vmatprep.subr.mxu0 0.0
    %346 = vmatpush2.msra.mxu0 0.0
    %347 = vmatprep.subr.mxu0 0.0
    %348 = vmatpush2.msra.mxu0 0.0
    %349 = vmatprep.subr.mxu0 0.0
    %350 = vmatpush2.msra.mxu0 0.0
    %351 = vmatprep.subr.mxu0 0.0
    %352 = vmatpush2.msra.mxu0 0.0
    %353 = vmatprep.subr.mxu0 0.0
    %354 = vmatpush2.msra.mxu0 0.0
    %355 = vmatprep.mubr.f32.mxu0 0.0
    %356 = vmatmul.mubr.f32.gmra.mxu0 %v286
    %v357 = vpop.f32.mrf.mxu0
    %v358 = vadd.f32 0.0, %v357
    %v359 = vpop.f32.mrf.mxu0
    %360 = vmatprep.mubr.f32.mxu0 0.0
    %361 = vmatmul.mubr.f32.gmra.mxu0 %v289
    %v362 = vpop.f32.mrf.mxu0
    %v363 = vadd.f32 0.0, %v362
    %v364 = vpop.f32.mrf.mxu0
    %365 = vdwg.mxu0
    %v366 = vadd.f32 %v280, %v358
    %v367 = vadd.f32 %v281, %v363
    %v368 = vmax.f32 %v366, 0.0
    %v369 = vmax.f32 %v367, 0.0
    %s370 = sld [smem:[#allocation6]]
    %v371 = vstv %s370
    %v372 = vmul.f32 %v371, %v131
    %v373 = vmul.f32 %v371, %v132
    %s374 = sld [smem:[#allocation6 + $0x80]]
    %v375 = vstv %s374
    %v376 = vmul.f32 %v375, %v138
    %v377 = vmul.f32 %v375, %v139
    %v378 = vadd.f32 %v372, %v376
    %v379 = vadd.f32 %v373, %v377
    %s380 = sld [smem:[#allocation6 + $0x100]]
    %v381 = vstv %s380
    %v382 = vmul.f32 %v381, %v147
    %v383 = vmul.f32 %v381, %v148
    %v384 = vadd.f32 %v378, %v382
    %v385 = vadd.f32 %v379, %v383
    %s386 = sld [smem:[#allocation6 + $0x180]]
    %v387 = vstv %s386
    %v388 = vmul.f32 %v387, %v156
    %v389 = vmul.f32 %v387, %v157
    %v390 = vadd.f32 %v384, %v388
    %v391 = vadd.f32 %v385, %v389
    %s392 = sld [smem:[#allocation6 + $0x1]]
    %v393 = vstv %s392
    %v394 = vmul.f32 %v393, %v131
    %v395 = vmul.f32 %v393, %v132
    %s396 = sld [smem:[#allocation6 + $0x81]]
    %v397 = vstv %s396
    %v398 = vmul.f32 %v397, %v138
    %v399 = vmul.f32 %v397, %v139
    %v400 = vadd.f32 %v394, %v398
    %v401 = vadd.f32 %v395, %v399
    %s402 = sld [smem:[#allocation6 + $0x101]]
    %v403 = vstv %s402
    %v404 = vmul.f32 %v403, %v147
    %v405 = vmul.f32 %v403, %v148
    %v406 = vadd.f32 %v400, %v404
    %v407 = vadd.f32 %v401, %v405
    %s408 = sld [smem:[#allocation6 + $0x181]]
    %v409 = vstv %s408
    %v410 = vmul.f32 %v409, %v156
    %v411 = vmul.f32 %v409, %v157
    %v412 = vadd.f32 %v406, %v410
    %v413 = vadd.f32 %v407, %v411
    %v414 = vld [vmem:[#allocation13] sm:$0xff]
    %v415 = vld [vmem:[#allocation13 + $0x8] sm:$0xff]
    %v416 = vld [vmem:[#allocation13 + $0x10] sm:$0xff]
    %v417 = vld [vmem:[#allocation13 + $0x18] sm:$0xff]
    %vm418 = vcmask 261120
    %v420 = vsel %vm418, %v368, 0
    %v423 = vsel %vm418, %v369, 0
    %425 = vmatprep.subr.mxu0 0.0
    %426 = vmatpush1.msra.mxu0 0.0
    %427 = vmatprep.subr.mxu0 0.0
    %428 = vmatpush1.msra.mxu0 0.0
    %429 = vmatprep.subr.mxu0 0.0
    %430 = vmatpush1.msra.mxu0 0.0
    %431 = vmatprep.subr.mxu0 0.0
    %432 = vmatpush1.msra.mxu0 0.0
    %433 = vmatprep.subr.mxu0 0.0
    %434 = vmatpush1.msra.mxu0 0.0
    %435 = vmatprep.subr.mxu0 0.0
    %436 = vmatpush1.msra.mxu0 0.0
    %437 = vmatprep.subr.mxu0 0.0
    %438 = vmatpush1.msra.mxu0 0.0
    %439 = vmatprep.subr.mxu0 0.0
    %440 = vmatpush1.msra.mxu0 0.0
    %441 = vmatprep.subr.mxu0 0.0
    %442 = vmatpush1.msra.mxu0 0.0
    %443 = vmatprep.subr.mxu0 0.0
    %444 = vmatpush1.msra.mxu0 0.0
    %445 = vmatprep.subr.mxu0 0.0
    %446 = vmatpush1.msra.mxu0 0.0
    %447 = vmatprep.subr.mxu0 0.0
    %448 = vmatpush1.msra.mxu0 0.0
    %449 = vmatprep.subr.mxu0 0.0
    %450 = vmatpush1.msra.mxu0 %v417
    %451 = vmatprep.subr.mxu0 0.0
    %452 = vmatpush1.msra.mxu0 %v416
    %453 = vmatprep.subr.mxu0 0.0
    %454 = vmatpush1.msra.mxu0 %v415
    %455 = vmatprep.subr.mxu0 0.0
    %456 = vmatpush1.msra.mxu0 %v414
    %457 = vmatprep.subr.mxu0 0.0
    %458 = vmatpush2.msra.mxu0 0.0
    %459 = vmatprep.subr.mxu0 0.0
    %460 = vmatpush2.msra.mxu0 0.0
    %461 = vmatprep.subr.mxu0 0.0
    %462 = vmatpush2.msra.mxu0 0.0
    %463 = vmatprep.subr.mxu0 0.0
    %464 = vmatpush2.msra.mxu0 0.0
    %465 = vmatprep.subr.mxu0 0.0
    %466 = vmatpush2.msra.mxu0 0.0
    %467 = vmatprep.subr.mxu0 0.0
    %468 = vmatpush2.msra.mxu0 0.0
    %469 = vmatprep.subr.mxu0 0.0
    %470 = vmatpush2.msra.mxu0 0.0
    %471 = vmatprep.subr.mxu0 0.0
    %472 = vmatpush2.msra.mxu0 0.0
    %473 = vmatprep.subr.mxu0 0.0
    %474 = vmatpush2.msra.mxu0 0.0
    %475 = vmatprep.subr.mxu0 0.0
    %476 = vmatpush2.msra.mxu0 0.0
    %477 = vmatprep.subr.mxu0 0.0
    %478 = vmatpush2.msra.mxu0 0.0
    %479 = vmatprep.subr.mxu0 0.0
    %480 = vmatpush2.msra.mxu0 0.0
    %481 = vmatprep.subr.mxu0 0.0
    %482 = vmatpush2.msra.mxu0 0.0
    %483 = vmatprep.subr.mxu0 0.0
    %484 = vmatpush2.msra.mxu0 0.0
    %485 = vmatprep.subr.mxu0 0.0
    %486 = vmatpush2.msra.mxu0 0.0
    %487 = vmatprep.subr.mxu0 0.0
    %488 = vmatpush2.msra.mxu0 0.0
    %489 = vmatprep.mubr.f32.mxu0 0.0
    %490 = vmatmul.mubr.f32.gmra.mxu0 %v420
    %v491 = vpop.f32.mrf.mxu0
    %v492 = vadd.f32 0.0, %v491
    %v493 = vpop.f32.mrf.mxu0
    %494 = vmatprep.mubr.f32.mxu0 0.0
    %495 = vmatmul.mubr.f32.gmra.mxu0 %v423
    %v496 = vpop.f32.mrf.mxu0
    %v497 = vadd.f32 0.0, %v496
    %v498 = vpop.f32.mrf.mxu0
    %499 = vdwg.mxu0
    %v500 = vld [vmem:[%s8] sm:$0x1]
    %v502 = vlaneseq
    %v503 = vshrl.u32 %v502, 7
    %v504 = vsub.s32 0, %v503
    %v505 = vrot.slane %v500, %v504
    %506 = vrot.lane.b32.xlu0 %v505, 64
    %v507 = vpop.permute.xlu0 %506
    %v509 = vadd.f32 %v492, %v507
    %v510 = vadd.f32 %v497, %v507
    %v512 = vsel %vm198, %v390, 0
    %v515 = vsel %vm198, %v391, 0
    %517 = vmatprep.subr.mxu0 0.0
    %518 = vmatpush1.msra.mxu0 0.0
    %519 = vmatprep.subr.mxu0 0.0
    %520 = vmatpush1.msra.mxu0 0.0
    %521 = vmatprep.subr.mxu0 0.0
    %522 = vmatpush1.msra.mxu0 0.0
    %523 = vmatprep.subr.mxu0 0.0
    %524 = vmatpush1.msra.mxu0 0.0
    %525 = vmatprep.subr.mxu0 0.0
    %526 = vmatpush1.msra.mxu0 0.0
    %527 = vmatprep.subr.mxu0 0.0
    %528 = vmatpush1.msra.mxu0 0.0
    %529 = vmatprep.subr.mxu0 0.0
    %530 = vmatpush1.msra.mxu0 0.0
    %531 = vmatprep.subr.mxu0 0.0
    %532 = vmatpush1.msra.mxu0 0.0
    %533 = vmatprep.subr.mxu0 0.0
    %534 = vmatpush1.msra.mxu0 0.0
    %535 = vmatprep.subr.mxu0 0.0
    %536 = vmatpush1.msra.mxu0 0.0
    %537 = vmatprep.subr.mxu0 0.0
    %538 = vmatpush1.msra.mxu0 0.0
    %539 = vmatprep.subr.mxu0 0.0
    %540 = vmatpush1.msra.mxu0 0.0
    %541 = vmatprep.subr.mxu0 0.0
    %542 = vmatpush1.msra.mxu0 0.0
    %543 = vmatprep.subr.mxu0 0.0
    %544 = vmatpush1.msra.mxu0 0.0
    %545 = vmatprep.subr.mxu0 0.0
    %546 = vmatpush1.msra.mxu0 %v497
    %547 = vmatprep.subr.mxu0 0.0
    %548 = vmatpush1.msra.mxu0 %v492
    %549 = vmatprep.subr.mxu0 0.0
    %550 = vmatpush2.msra.mxu0 0.0
    %551 = vmatprep.subr.mxu0 0.0
    %552 = vmatpush2.msra.mxu0 0.0
    %553 = vmatprep.subr.mxu0 0.0
    %554 = vmatpush2.msra.mxu0 0.0
    %555 = vmatprep.subr.mxu0 0.0
    %556 = vmatpush2.msra.mxu0 0.0
    %557 = vmatprep.subr.mxu0 0.0
    %558 = vmatpush2.msra.mxu0 0.0
    %559 = vmatprep.subr.mxu0 0.0
    %560 = vmatpush2.msra.mxu0 0.0
    %561 = vmatprep.subr.mxu0 0.0
    %562 = vmatpush2.msra.mxu0 0.0
    %563 = vmatprep.subr.mxu0 0.0
    %564 = vmatpush2.msra.mxu0 0.0
    %565 = vmatprep.subr.mxu0 0.0
    %566 = vmatpush2.msra.mxu0 0.0
    %567 = vmatprep.subr.mxu0 0.0
    %568 = vmatpush2.msra.mxu0 0.0
    %569 = vmatprep.subr.mxu0 0.0
    %570 = vmatpush2.msra.mxu0 0.0
    %571 = vmatprep.subr.mxu0 0.0
    %572 = vmatpush2.msra.mxu0 0.0
    %573 = vmatprep.subr.mxu0 0.0
    %574 = vmatpush2.msra.mxu0 0.0
    %575 = vmatprep.subr.mxu0 0.0
    %576 = vmatpush2.msra.mxu0 0.0
    %577 = vmatprep.subr.mxu0 0.0
    %578 = vmatpush2.msra.mxu0 0.0
    %579 = vmatprep.subr.mxu0 0.0
    %580 = vmatpush2.msra.mxu0 0.0
    %581 = vmatprep.mubr.f32.mxu0 0.0
    %582 = vmatmul.mubr.f32.gmra.mxu0 %v512
    %v583 = vpop.f32.mrf.mxu0
    %v584 = vadd.f32 0.0, %v583
    %v585 = vpop.f32.mrf.mxu0
    %586 = vmatprep.mubr.f32.mxu0 0.0
    %587 = vmatmul.mubr.f32.gmra.mxu0 %v515
    %v588 = vpop.f32.mrf.mxu0
    %v589 = vadd.f32 0.0, %v588
    %v590 = vpop.f32.mrf.mxu0
    %591 = vdwg.mxu0
    %594 = vrot.lane.b32.xlu0 %v584, 64
    %v595 = vpop.permute.xlu0 %594
    %596 = vrot.lane.b32.xlu0 %v589, 64
    %v597 = vpop.permute.xlu0 %596
    %v600 = vadd.f32 %v509, %v595
    %v601 = vadd.f32 %v510, %v597
    %604 = vrot.lane.b32.xlu0 %v492, 96
    %v605 = vpop.permute.xlu0 %604
    %606 = vrot.lane.b32.xlu0 %v497, 96
    %v607 = vpop.permute.xlu0 %606
    %v611 = vsel %vm198, %v412, 0
    %v614 = vsel %vm198, %v413, 0
    %616 = vmatprep.subr.mxu0 0.0
    %617 = vmatpush1.msra.mxu0 0.0
    %618 = vmatprep.subr.mxu0 0.0
    %619 = vmatpush1.msra.mxu0 0.0
    %620 = vmatprep.subr.mxu0 0.0
    %621 = vmatpush1.msra.mxu0 0.0
    %622 = vmatprep.subr.mxu0 0.0
    %623 = vmatpush1.msra.mxu0 0.0
    %624 = vmatprep.subr.mxu0 0.0
    %625 = vmatpush1.msra.mxu0 0.0
    %626 = vmatprep.subr.mxu0 0.0
    %627 = vmatpush1.msra.mxu0 0.0
    %628 = vmatprep.subr.mxu0 0.0
    %629 = vmatpush1.msra.mxu0 0.0
    %630 = vmatprep.subr.mxu0 0.0
    %631 = vmatpush1.msra.mxu0 0.0
    %632 = vmatprep.subr.mxu0 0.0
    %633 = vmatpush1.msra.mxu0 0.0
    %634 = vmatprep.subr.mxu0 0.0
    %635 = vmatpush1.msra.mxu0 0.0
    %636 = vmatprep.subr.mxu0 0.0
    %637 = vmatpush1.msra.mxu0 0.0
    %638 = vmatprep.subr.mxu0 0.0
    %639 = vmatpush1.msra.mxu0 0.0
    %640 = vmatprep.subr.mxu0 0.0
    %641 = vmatpush1.msra.mxu0 0.0
    %642 = vmatprep.subr.mxu0 0.0
    %643 = vmatpush1.msra.mxu0 0.0
    %644 = vmatprep.subr.mxu0 0.0
    %645 = vmatpush1.msra.mxu0 %v607
    %646 = vmatprep.subr.mxu0 0.0
    %647 = vmatpush1.msra.mxu0 %v605
    %648 = vmatprep.subr.mxu0 0.0
    %649 = vmatpush2.msra.mxu0 0.0
    %650 = vmatprep.subr.mxu0 0.0
    %651 = vmatpush2.msra.mxu0 0.0
    %652 = vmatprep.subr.mxu0 0.0
    %653 = vmatpush2.msra.mxu0 0.0
    %654 = vmatprep.subr.mxu0 0.0
    %655 = vmatpush2.msra.mxu0 0.0
    %656 = vmatprep.subr.mxu0 0.0
    %657 = vmatpush2.msra.mxu0 0.0
    %658 = vmatprep.subr.mxu0 0.0
    %659 = vmatpush2.msra.mxu0 0.0
    %660 = vmatprep.subr.mxu0 0.0
    %661 = vmatpush2.msra.mxu0 0.0
    %662 = vmatprep.subr.mxu0 0.0
    %663 = vmatpush2.msra.mxu0 0.0
    %664 = vmatprep.subr.mxu0 0.0
    %665 = vmatpush2.msra.mxu0 0.0
    %666 = vmatprep.subr.mxu0 0.0
    %667 = vmatpush2.msra.mxu0 0.0
    %668 = vmatprep.subr.mxu0 0.0
    %669 = vmatpush2.msra.mxu0 0.0
    %670 = vmatprep.subr.mxu0 0.0
    %671 = vmatpush2.msra.mxu0 0.0
    %672 = vmatprep.subr.mxu0 0.0
    %673 = vmatpush2.msra.mxu0 0.0
    %674 = vmatprep.subr.mxu0 0.0
    %675 = vmatpush2.msra.mxu0 0.0
    %676 = vmatprep.subr.mxu0 0.0
    %677 = vmatpush2.msra.mxu0 0.0
    %678 = vmatprep.subr.mxu0 0.0
    %679 = vmatpush2.msra.mxu0 0.0
    %680 = vmatprep.mubr.f32.mxu0 0.0
    %681 = vmatmul.mubr.f32.gmra.mxu0 %v611
    %v682 = vpop.f32.mrf.mxu0
    %v683 = vadd.f32 0.0, %v682
    %v684 = vpop.f32.mrf.mxu0
    %685 = vmatprep.mubr.f32.mxu0 0.0
    %686 = vmatmul.mubr.f32.gmra.mxu0 %v614
    %v687 = vpop.f32.mrf.mxu0
    %v688 = vadd.f32 0.0, %v687
    %v689 = vpop.f32.mrf.mxu0
    %690 = vdwg.mxu0
    %693 = vrot.lane.b32.xlu0 %v683, 64
    %v694 = vpop.permute.xlu0 %693
    %695 = vrot.lane.b32.xlu0 %v688, 64
    %v696 = vpop.permute.xlu0 %695
    %v699 = vadd.f32 %v600, %v694
    %v700 = vadd.f32 %v601, %v696
    %v701 = vmax.f32 %v699, 0.0
    %v702 = vmax.f32 %v700, 0.0
    %s703 = sld [smem:[#allocation8]]
    %v704 = vstv %s703
    %v705 = vmul.f32 %v704, %v131
    %v706 = vmul.f32 %v704, %v132
    %s707 = sld [smem:[#allocation8 + $0x80]]
    %v708 = vstv %s707
    %v709 = vmul.f32 %v708, %v138
    %v710 = vmul.f32 %v708, %v139
    %v711 = vadd.f32 %v705, %v709
    %v712 = vadd.f32 %v706, %v710
    %s713 = sld [smem:[#allocation8 + $0x100]]
    %v714 = vstv %s713
    %v715 = vmul.f32 %v714, %v147
    %v716 = vmul.f32 %v714, %v148
    %v717 = vadd.f32 %v711, %v715
    %v718 = vadd.f32 %v712, %v716
    %s719 = sld [smem:[#allocation8 + $0x180]]
    %v720 = vstv %s719
    %v721 = vmul.f32 %v720, %v156
    %v722 = vmul.f32 %v720, %v157
    %v723 = vadd.f32 %v717, %v721
    %v724 = vadd.f32 %v718, %v722
    %s725 = sld [smem:[#allocation8 + $0x1]]
    %v726 = vstv %s725
    %v727 = vmul.f32 %v726, %v131
    %v728 = vmul.f32 %v726, %v132
    %s729 = sld [smem:[#allocation8 + $0x81]]
    %v730 = vstv %s729
    %v731 = vmul.f32 %v730, %v138
    %v732 = vmul.f32 %v730, %v139
    %v733 = vadd.f32 %v727, %v731
    %v734 = vadd.f32 %v728, %v732
    %s735 = sld [smem:[#allocation8 + $0x101]]
    %v736 = vstv %s735
    %v737 = vmul.f32 %v736, %v147
    %v738 = vmul.f32 %v736, %v148
    %v739 = vadd.f32 %v733, %v737
    %v740 = vadd.f32 %v734, %v738
    %s741 = sld [smem:[#allocation8 + $0x181]]
    %v742 = vstv %s741
    %v743 = vmul.f32 %v742, %v156
    %v744 = vmul.f32 %v742, %v157
    %v745 = vadd.f32 %v739, %v743
    %v746 = vadd.f32 %v740, %v744
    %v747 = vld [vmem:[%s9] sm:$0xff]
    %v748 = vld [vmem:[%s9 + $0x8] sm:$0xff]
    %v749 = vld [vmem:[%s9 + $0x10] sm:$0xff]
    %v750 = vld [vmem:[%s9 + $0x18] sm:$0xff]
    %753 = vrot.lane.b32.xlu0 %v701, 64
    %v754 = vpop.permute.xlu0 %753
    %755 = vrot.lane.b32.xlu0 %v702, 64
    %v756 = vpop.permute.xlu0 %755
    %v757 = vsel %vm418, %v754, 0
    %v759 = vsel %vm418, %v756, 0
    %761 = vmatprep.subr.mxu0 0.0
    %762 = vmatpush1.msra.mxu0 0.0
    %763 = vmatprep.subr.mxu0 0.0
    %764 = vmatpush1.msra.mxu0 0.0
    %765 = vmatprep.subr.mxu0 0.0
    %766 = vmatpush1.msra.mxu0 0.0
    %767 = vmatprep.subr.mxu0 0.0
    %768 = vmatpush1.msra.mxu0 0.0
    %769 = vmatprep.subr.mxu0 0.0
    %770 = vmatpush1.msra.mxu0 0.0
    %771 = vmatprep.subr.mxu0 0.0
    %772 = vmatpush1.msra.mxu0 0.0
    %773 = vmatprep.subr.mxu0 0.0
    %774 = vmatpush1.msra.mxu0 0.0
    %775 = vmatprep.subr.mxu0 0.0
    %776 = vmatpush1.msra.mxu0 0.0
    %777 = vmatprep.subr.mxu0 0.0
    %778 = vmatpush1.msra.mxu0 0.0
    %779 = vmatprep.subr.mxu0 0.0
    %780 = vmatpush1.msra.mxu0 0.0
    %781 = vmatprep.subr.mxu0 0.0
    %782 = vmatpush1.msra.mxu0 0.0
    %783 = vmatprep.subr.mxu0 0.0
    %784 = vmatpush1.msra.mxu0 0.0
    %785 = vmatprep.subr.mxu0 0.0
    %786 = vmatpush1.msra.mxu0 %v750
    %787 = vmatprep.subr.mxu0 0.0
    %788 = vmatpush1.msra.mxu0 %v749
    %789 = vmatprep.subr.mxu0 0.0
    %790 = vmatpush1.msra.mxu0 %v748
    %791 = vmatprep.subr.mxu0 0.0
    %792 = vmatpush1.msra.mxu0 %v747
    %793 = vmatprep.subr.mxu0 0.0
    %794 = vmatpush2.msra.mxu0 0.0
    %795 = vmatprep.subr.mxu0 0.0
    %796 = vmatpush2.msra.mxu0 0.0
    %797 = vmatprep.subr.mxu0 0.0
    %798 = vmatpush2.msra.mxu0 0.0
    %799 = vmatprep.subr.mxu0 0.0
    %800 = vmatpush2.msra.mxu0 0.0
    %801 = vmatprep.subr.mxu0 0.0
    %802 = vmatpush2.msra.mxu0 0.0
    %803 = vmatprep.subr.mxu0 0.0
    %804 = vmatpush2.msra.mxu0 0.0
    %805 = vmatprep.subr.mxu0 0.0
    %806 = vmatpush2.msra.mxu0 0.0
    %807 = vmatprep.subr.mxu0 0.0
    %808 = vmatpush2.msra.mxu0 0.0
    %809 = vmatprep.subr.mxu0 0.0
    %810 = vmatpush2.msra.mxu0 0.0
    %811 = vmatprep.subr.mxu0 0.0
    %812 = vmatpush2.msra.mxu0 0.0
    %813 = vmatprep.subr.mxu0 0.0
    %814 = vmatpush2.msra.mxu0 0.0
    %815 = vmatprep.subr.mxu0 0.0
    %816 = vmatpush2.msra.mxu0 0.0
    %817 = vmatprep.subr.mxu0 0.0
    %818 = vmatpush2.msra.mxu0 0.0
    %819 = vmatprep.subr.mxu0 0.0
    %820 = vmatpush2.msra.mxu0 0.0
    %821 = vmatprep.subr.mxu0 0.0
    %822 = vmatpush2.msra.mxu0 0.0
    %823 = vmatprep.subr.mxu0 0.0
    %824 = vmatpush2.msra.mxu0 0.0
    %825 = vmatprep.mubr.f32.mxu0 0.0
    %826 = vmatmul.mubr.f32.gmra.mxu0 %v757
    %v827 = vpop.f32.mrf.mxu0
    %v828 = vadd.f32 0.0, %v827
    %v829 = vpop.f32.mrf.mxu0
    %830 = vmatprep.mubr.f32.mxu0 0.0
    %831 = vmatmul.mubr.f32.gmra.mxu0 %v759
    %v832 = vpop.f32.mrf.mxu0
    %v833 = vadd.f32 0.0, %v832
    %v834 = vpop.f32.mrf.mxu0
    %835 = vdwg.mxu0
    %v836 = vld [vmem:[%s10] sm:$0x1]
    %v838 = vlaneseq
    %v839 = vshrl.u32 %v838, 7
    %v840 = vsub.s32 0, %v839
    %v841 = vrot.slane %v836, %v840
    %842 = vrot.lane.b32.xlu0 %v841, 32
    %v843 = vpop.permute.xlu0 %842
    %v845 = vadd.f32 %v828, %v843
    %v846 = vadd.f32 %v833, %v843
    %v848 = vsel %vm198, %v723, 0
    %v851 = vsel %vm198, %v724, 0
    %853 = vmatprep.subr.mxu0 0.0
    %854 = vmatpush1.msra.mxu0 0.0
    %855 = vmatprep.subr.mxu0 0.0
    %856 = vmatpush1.msra.mxu0 0.0
    %857 = vmatprep.subr.mxu0 0.0
    %858 = vmatpush1.msra.mxu0 0.0
    %859 = vmatprep.subr.mxu0 0.0
    %860 = vmatpush1.msra.mxu0 0.0
    %861 = vmatprep.subr.mxu0 0.0
    %862 = vmatpush1.msra.mxu0 0.0
    %863 = vmatprep.subr.mxu0 0.0
    %864 = vmatpush1.msra.mxu0 0.0
    %865 = vmatprep.subr.mxu0 0.0
    %866 = vmatpush1.msra.mxu0 0.0
    %867 = vmatprep.subr.mxu0 0.0
    %868 = vmatpush1.msra.mxu0 0.0
    %869 = vmatprep.subr.mxu0 0.0
    %870 = vmatpush1.msra.mxu0 0.0
    %871 = vmatprep.subr.mxu0 0.0
    %872 = vmatpush1.msra.mxu0 0.0
    %873 = vmatprep.subr.mxu0 0.0
    %874 = vmatpush1.msra.mxu0 0.0
    %875 = vmatprep.subr.mxu0 0.0
    %876 = vmatpush1.msra.mxu0 0.0
    %877 = vmatprep.subr.mxu0 0.0
    %878 = vmatpush1.msra.mxu0 0.0
    %879 = vmatprep.subr.mxu0 0.0
    %880 = vmatpush1.msra.mxu0 0.0
    %881 = vmatprep.subr.mxu0 0.0
    %882 = vmatpush1.msra.mxu0 %v833
    %883 = vmatprep.subr.mxu0 0.0
    %884 = vmatpush1.msra.mxu0 %v828
    %885 = vmatprep.subr.mxu0 0.0
    %886 = vmatpush2.msra.mxu0 0.0
    %887 = vmatprep.subr.mxu0 0.0
    %888 = vmatpush2.msra.mxu0 0.0
    %889 = vmatprep.subr.mxu0 0.0
    %890 = vmatpush2.msra.mxu0 0.0
    %891 = vmatprep.subr.mxu0 0.0
    %892 = vmatpush2.msra.mxu0 0.0
    %893 = vmatprep.subr.mxu0 0.0
    %894 = vmatpush2.msra.mxu0 0.0
    %895 = vmatprep.subr.mxu0 0.0
    %896 = vmatpush2.msra.mxu0 0.0
    %897 = vmatprep.subr.mxu0 0.0
    %898 = vmatpush2.msra.mxu0 0.0
    %899 = vmatprep.subr.mxu0 0.0
    %900 = vmatpush2.msra.mxu0 0.0
    %901 = vmatprep.subr.mxu0 0.0
    %902 = vmatpush2.msra.mxu0 0.0
    %903 = vmatprep.subr.mxu0 0.0
    %904 = vmatpush2.msra.mxu0 0.0
    %905 = vmatprep.subr.mxu0 0.0
    %906 = vmatpush2.msra.mxu0 0.0
    %907 = vmatprep.subr.mxu0 0.0
    %908 = vmatpush2.msra.mxu0 0.0
    %909 = vmatprep.subr.mxu0 0.0
    %910 = vmatpush2.msra.mxu0 0.0
    %911 = vmatprep.subr.mxu0 0.0
    %912 = vmatpush2.msra.mxu0 0.0
    %913 = vmatprep.subr.mxu0 0.0
    %914 = vmatpush2.msra.mxu0 0.0
    %915 = vmatprep.subr.mxu0 0.0
    %916 = vmatpush2.msra.mxu0 0.0
    %917 = vmatprep.mubr.f32.mxu0 0.0
    %918 = vmatmul.mubr.f32.gmra.mxu0 %v848
    %v919 = vpop.f32.mrf.mxu0
    %v920 = vadd.f32 0.0, %v919
    %v921 = vpop.f32.mrf.mxu0
    %922 = vmatprep.mubr.f32.mxu0 0.0
    %923 = vmatmul.mubr.f32.gmra.mxu0 %v851
    %v924 = vpop.f32.mrf.mxu0
    %v925 = vadd.f32 0.0, %v924
    %v926 = vpop.f32.mrf.mxu0
    %927 = vdwg.mxu0
    %930 = vrot.lane.b32.xlu0 %v920, 32
    %v931 = vpop.permute.xlu0 %930
    %932 = vrot.lane.b32.xlu0 %v925, 32
    %v933 = vpop.permute.xlu0 %932
    %v936 = vadd.f32 %v845, %v931
    %v937 = vadd.f32 %v846, %v933
    %940 = vrot.lane.b32.xlu0 %v828, 112
    %v941 = vpop.permute.xlu0 %940
    %942 = vrot.lane.b32.xlu0 %v833, 112
    %v943 = vpop.permute.xlu0 %942
    %v947 = vsel %vm198, %v745, 0
    %v950 = vsel %vm198, %v746, 0
    %952 = vmatprep.subr.mxu0 0.0
    %953 = vmatpush1.msra.mxu0 0.0
    %954 = vmatprep.subr.mxu0 0.0
    %955 = vmatpush1.msra.mxu0 0.0
    %956 = vmatprep.subr.mxu0 0.0
    %957 = vmatpush1.msra.mxu0 0.0
    %958 = vmatprep.subr.mxu0 0.0
    %959 = vmatpush1.msra.mxu0 0.0
    %960 = vmatprep.subr.mxu0 0.0
    %961 = vmatpush1.msra.mxu0 0.0
    %962 = vmatprep.subr.mxu0 0.0
    %963 = vmatpush1.msra.mxu0 0.0
    %964 = vmatprep.subr.mxu0 0.0
    %965 = vmatpush1.msra.mxu0 0.0
    %966 = vmatprep.subr.mxu0 0.0
    %967 = vmatpush1.msra.mxu0 0.0
    %968 = vmatprep.subr.mxu0 0.0
    %969 = vmatpush1.msra.mxu0 0.0
    %970 = vmatprep.subr.mxu0 0.0
    %971 = vmatpush1.msra.mxu0 0.0
    %972 = vmatprep.subr.mxu0 0.0
    %973 = vmatpush1.msra.mxu0 0.0
    %974 = vmatprep.subr.mxu0 0.0
    %975 = vmatpush1.msra.mxu0 0.0
    %976 = vmatprep.subr.mxu0 0.0
    %977 = vmatpush1.msra.mxu0 0.0
    %978 = vmatprep.subr.mxu0 0.0
    %979 = vmatpush1.msra.mxu0 0.0
    %980 = vmatprep.subr.mxu0 0.0
    %981 = vmatpush1.msra.mxu0 %v943
    %982 = vmatprep.subr.mxu0 0.0
    %983 = vmatpush1.msra.mxu0 %v941
    %984 = vmatprep.subr.mxu0 0.0
    %985 = vmatpush2.msra.mxu0 0.0
    %986 = vmatprep.subr.mxu0 0.0
    %987 = vmatpush2.msra.mxu0 0.0
    %988 = vmatprep.subr.mxu0 0.0
    %989 = vmatpush2.msra.mxu0 0.0
    %990 = vmatprep.subr.mxu0 0.0
    %991 = vmatpush2.msra.mxu0 0.0
    %992 = vmatprep.subr.mxu0 0.0
    %993 = vmatpush2.msra.mxu0 0.0
    %994 = vmatprep.subr.mxu0 0.0
    %995 = vmatpush2.msra.mxu0 0.0
    %996 = vmatprep.subr.mxu0 0.0
    %997 = vmatpush2.msra.mxu0 0.0
    %998 = vmatprep.subr.mxu0 0.0
    %999 = vmatpush2.msra.mxu0 0.0
    %1000 = vmatprep.subr.mxu0 0.0
    %1001 = vmatpush2.msra.mxu0 0.0
    %1002 = vmatprep.subr.mxu0 0.0
    %1003 = vmatpush2.msra.mxu0 0.0
    %1004 = vmatprep.subr.mxu0 0.0
    %1005 = vmatpush2.msra.mxu0 0.0
    %1006 = vmatprep.subr.mxu0 0.0
    %1007 = vmatpush2.msra.mxu0 0.0
    %1008 = vmatprep.subr.mxu0 0.0
    %1009 = vmatpush2.msra.mxu0 0.0
    %1010 = vmatprep.subr.mxu0 0.0
    %1011 = vmatpush2.msra.mxu0 0.0
    %1012 = vmatprep.subr.mxu0 0.0
    %1013 = vmatpush2.msra.mxu0 0.0
    %1014 = vmatprep.subr.mxu0 0.0
    %1015 = vmatpush2.msra.mxu0 0.0
    %1016 = vmatprep.mubr.f32.mxu0 0.0
    %1017 = vmatmul.mubr.f32.gmra.mxu0 %v947
    %v1018 = vpop.f32.mrf.mxu0
    %v1019 = vadd.f32 0.0, %v1018
    %v1020 = vpop.f32.mrf.mxu0
    %1021 = vmatprep.mubr.f32.mxu0 0.0
    %1022 = vmatmul.mubr.f32.gmra.mxu0 %v950
    %v1023 = vpop.f32.mrf.mxu0
    %v1024 = vadd.f32 0.0, %v1023
    %v1025 = vpop.f32.mrf.mxu0
    %1026 = vdwg.mxu0
    %1029 = vrot.lane.b32.xlu0 %v1019, 32
    %v1030 = vpop.permute.xlu0 %1029
    %1031 = vrot.lane.b32.xlu0 %v1024, 32
    %v1032 = vpop.permute.xlu0 %1031
    %v1035 = vadd.f32 %v936, %v1030
    %v1036 = vadd.f32 %v937, %v1032
    %v1037 = vmax.f32 %v1035, 0.0
    %v1038 = vmax.f32 %v1036, 0.0
    %1041 = vrot.lane.b32.xlu0 %v1037, 96
    %v1042 = vpop.permute.xlu0 %1041
    %1043 = vrot.lane.b32.xlu0 %v1038, 96
    %v1044 = vpop.permute.xlu0 %1043
    %1047 = vst.msk [vmem:[#allocation15] sm:$0xff] %vm198, %v1042
    %1048 = vst.msk [vmem:[#allocation15 + $0x8] sm:$0xff] %vm198, %v1044
    // Predicated region
    $region74: #{tpu_custom_call.1} parent=1 // pred_check
      _
    $region75: #{tpu_custom_call.1} parent=1 // pred_check_branch
      %1050 = sbr.rel (0) target = $region77
    $region76: #{tpu_custom_call.1} parent=1 // pred_region
      %s1052 = ssub.s32 256, 256
      %1053 = vsyncadd [#allocation4], %s1052
      %s1054 = sshll.u32 [#allocation15], 4
      %s1055 = int_to_ptr.vmem [resolvable:$true] %s1054
      %1060 = dma.vmem_to_hbm [thread:$0]  %s1055, 256, %s11, [#allocation4], 128, 128, 8
    $region77: #{tpu_custom_call.1} parent=1 // pred_fallthru
      _
    // Predicated region
    $region78: #{tpu_custom_call.1} parent=1 // pred_check
      _
    $region79: #{tpu_custom_call.1} parent=1 // pred_check_branch
      %1062 = sbr.rel (0) target = $region81
    $region80: #{tpu_custom_call.1} parent=1 // pred_region
      %1063 = dma.done [#allocation4], 256
    $region81: #{tpu_custom_call.1} parent=1 // pred_fallthru
      _
    %1064 = vsyncpa [#allocation3], 1
    %1065 = vsyncpa [#allocation11], 1
    %1066 = vsyncpa [#allocation14], 1
    %1067 = vsyncpa [#allocation4], 1
    %1068 = vsyncpa [#allocation5], 1
    %1069 = vsyncpa [#allocation7], 1

</llo_original>
